<compile_context>
chip_gen: v5e
topology: v5e:2x2
jax: 0.10.0
libtpu: 0.0.40
codegen_flags: <defaults>
</compile_context>

<pallas_src>
import jax
import jax.numpy as jnp
from jax.experimental import pallas as pl
from jax.experimental.pallas import tpu as pltpu


def _round_up(x, m):
    return (x + m - 1) // m * m


def _vmem_capacity_bytes():
    try:
        return int(pltpu.get_tpu_info().vmem_capacity_bytes)
    except Exception:
        return 64 << 20  # conservative (v7x per-TensorCore)


def _gene_decoder_kernel(x_ref, w1_ref, b1_ref, w2_ref, b2_ref, o_ref, h_ref):
    # fc1 + bias + ReLU computed once per N tile (j == 0), reused across all
    # F tiles via the persistent VMEM scratch h_ref.
    @pl.when(pl.program_id(1) == 0)
    def _():
        h = jnp.dot(x_ref[...].astype(jnp.bfloat16), w1_ref[...],
                    preferred_element_type=jnp.float32)
        # Dropout(p=0.5) == identity in eval mode.
        h_ref[...] = jnp.maximum(h + b1_ref[...], 0.0).astype(jnp.bfloat16)

    # fc2 on the current (H2, tile_f) column block of w2.
    y = jnp.dot(h_ref[...], w2_ref[...], preferred_element_type=jnp.float32)
    o_ref[...] = (y + b2_ref[...]).astype(o_ref.dtype)


def make_gene_decoder(w1, b1, w2, b2, *, tile_n=None, tile_f=None,
                      out_dtype=jnp.float32):
    """One-time parameter prep (pad + bf16 cast) -> jitted forward fn.

    w1: (H, 2H)  f32  (in_features x out_features == torch fc1.weight.T)
    b1: (2H,) or (1, 2H)
    w2: (2H, F)  f32
    b2: (F,)  or (1, F)
    Returned fn maps x:(N, H) f32 -> (N, F) out_dtype.
    """
    H, H2 = w1.shape
    F_out = w2.shape[1]
    assert w2.shape[0] == H2

    vmem_cap = _vmem_capacity_bytes()

    # --- tile selection (derived from VMEM capacity, not hard-coded caps) ---
    if tile_n is None:
        tile_n = 1024 if vmem_cap >= (96 << 20) else 512
    tile_n = max(16, _round_up(tile_n, 16))          # bf16 sublane packing
    if tile_f is None:
        tile_f = 1024
    tile_f = max(128, _round_up(tile_f, 128))        # lane-dense output
    tile_f = min(tile_f, _round_up(F_out, 128))

    def footprint(tn, tf):
        resident = 2 * (H * H2 * 2 + H2 * 4)                       # w1 bf16, b1 f32
        stream = 2 * (tn * H * 4 + H2 * tf * 2 + tf * 4 + tn * tf * 4)  # dbl-buffered
        scratch = tn * H2 * 2                                      # h (bf16)
        live = tn * tf * 4 + tn * H2 * 4                           # f32 temporaries
        return resident + stream + scratch + live

    budget = int(0.70 * vmem_cap)
    while footprint(tile_n, tile_f) > budget and tile_f > 256:
        tile_f //= 2
    while footprint(tile_n, tile_f) > budget and tile_n > 128:
        tile_n //= 2

    Fp = _round_up(F_out, tile_f)

    # --- one-time prep: pad F dim to a tile multiple, cast matmul operands ---
    w1p = jnp.asarray(w1).astype(jnp.bfloat16)
    b1p = jnp.asarray(b1, jnp.float32).reshape(1, H2)
    w2p = jnp.pad(jnp.asarray(w2), ((0, 0), (0, Fp - F_out))).astype(jnp.bfloat16)
    b2p = jnp.pad(jnp.asarray(b2, jnp.float32).reshape(1, F_out),
                  ((0, 0), (0, Fp - F_out)))

    @jax.jit
    def forward(x):
        assert x.ndim == 2 and x.shape[1] == H
        N = x.shape[0]
        tn = min(tile_n, _round_up(N, 16))
        Np = _round_up(N, tn)
        x_in = x if Np == N else jnp.pad(x, ((0, Np - N), (0, 0)))
        grid = (Np // tn, Fp // tile_f)

        vmem_limit = min(int(0.85 * vmem_cap),
                         2 * footprint(tn, tile_f) + (8 << 20))
        vmem_limit = max(vmem_limit, 16 << 20)

        # Advisory cost from logical (unpadded) dims.
        cost = pl.CostEstimate(
            flops=2 * N * H * H2 + 2 * N * H2 * F_out,
            transcendentals=0,
            bytes_accessed=(N * H * 4 + N * F_out * 4
                            + H * H2 * 2 + H2 * F_out * 2 + (H2 + F_out) * 4),
        )

        out = pl.pallas_call(
            _gene_decoder_kernel,
            out_shape=jax.ShapeDtypeStruct((Np, Fp), out_dtype),
            grid_spec=pltpu.PrefetchScalarGridSpec(
                num_scalar_prefetch=0,
                grid=grid,
                in_specs=[
                    pl.BlockSpec((tn, H), lambda i, j: (i, 0)),       # x: f32 stream
                    pl.BlockSpec((H, H2), lambda i, j: (0, 0)),       # w1: resident
                    pl.BlockSpec((1, H2), lambda i, j: (0, 0)),       # b1: resident
                    pl.BlockSpec((H2, tile_f), lambda i, j: (0, j)),  # w2: F-tiled
                    pl.BlockSpec((1, tile_f), lambda i, j: (0, j)),   # b2: F-tiled
                ],
                out_specs=pl.BlockSpec((tn, tile_f), lambda i, j: (i, j)),
                scratch_shapes=[pltpu.VMEM((tn, H2), jnp.bfloat16)],  # fc1 output h
            ),
            compiler_params=pltpu.CompilerParams(
                dimension_semantics=("parallel", "arbitrary"),
                vmem_limit_bytes=int(vmem_limit),
            ),
            cost_estimate=cost,
        )(x_in, w1p, b1p, w2p, b2p)

        if Np != N or Fp != F_out:
            out = out[:N, :F_out]
        return out

    return forward


def init_params(key, hidden_channels, num_features_exp):
    """Deterministic PyTorch-style init: U(-1/sqrt(fan_in), 1/sqrt(fan_in))."""
    k1, k2, k3, k4 = jax.random.split(key, 4)
    H, H2, F_out = hidden_channels, hidden_channels * 2, num_features_exp
    bound1 = 1.0 / (H ** 0.5)
    bound2 = 1.0 / (H2 ** 0.5)
    # stored as (in, out) == PyTorch weight.T
    w1 = jax.random.uniform(k1, (H, H2), jnp.float32, -bound1, bound1)
    b1 = jax.random.uniform(k2, (1, H2), jnp.float32, -bound1, bound1)
    w2 = jax.random.uniform(k3, (H2, F_out), jnp.float32, -bound2, bound2)
    b2 = jax.random.uniform(k4, (1, F_out), jnp.float32, -bound2, bound2)
    return w1, b1, w2, b2


if __name__ == "__main__":
    hidden_channels = 32
    num_features_exp = 128
    batch = 8  # e.g. number of nodes / cells

    key = jax.random.PRNGKey(0)
    kx, kp = jax.random.split(key)

    x = jax.random.normal(kx, (batch, hidden_channels), jnp.float32)
    w1, b1, w2, b2 = init_params(kp, hidden_channels, num_features_exp)

    decoder = make_gene_decoder(w1, b1, w2, b2)
    out = jax.block_until_ready(decoder(x))

    # Pure-JAX f32 reference (eval-mode dropout == identity).  Kernel uses
    # bf16 MXU inputs with f32 accumulation, so tolerance is loosened.
    ref = jnp.maximum(x @ w1 + b1, 0.0) @ w2 + b2
    assert out.shape == (batch, num_features_exp)
    assert jnp.allclose(out, ref, atol=3e-2, rtol=3e-2), "mismatch vs reference"

    print("KERNEL_OK")
</pallas_src>

<mosaic_0001>
module attributes {stable_mosaic.version = 11 : i64} {
  func.func @_gene_decoder_kernel(%arg0: i32, %arg1: i32, %arg2: memref<16x32xf32, #tpu.memory_space<vmem>>, %arg3: memref<32x64xbf16, #tpu.memory_space<vmem>>, %arg4: memref<1x64xf32, #tpu.memory_space<vmem>>, %arg5: memref<64x128xbf16, #tpu.memory_space<vmem>>, %arg6: memref<1x128xf32, #tpu.memory_space<vmem>>, %arg7: memref<16x128xf32, #tpu.memory_space<vmem>>, %arg8: memref<16x64xbf16, #tpu.memory_space<vmem>>) attributes {dimension_semantics = [#tpu.dimension_semantics<parallel>, #tpu.dimension_semantics<arbitrary>], iteration_bounds = array<i64: 1, 1>, scalar_prefetch = 0 : i64, scratch_operands = 1 : i64, tpu.core_type = #tpu.core_type<tc>, window_params = [{transform_indices = @transform_0, window_bounds = array<i64: 16, 32>}, {pipeline_mode = #tpu.pipeline_mode<synchronous>, transform_indices = @transform_1, window_bounds = array<i64: 32, 64>}, {pipeline_mode = #tpu.pipeline_mode<synchronous>, transform_indices = @transform_2, window_bounds = array<i64: 1, 64>}, {transform_indices = @transform_3, window_bounds = array<i64: 64, 128>}, {transform_indices = @transform_4, window_bounds = array<i64: 1, 128>}, {transform_indices = @transform_5, window_bounds = array<i64: 16, 128>}]} {
    %c0_i32 = arith.constant 0 : i32
    %0 = arith.cmpi eq, %arg1, %c0_i32 : i32
    %1 = arith.extui %0 : i1 to i32
    %c0_i32_0 = arith.constant 0 : i32
    %2 = arith.cmpi ne, %1, %c0_i32_0 : i32
    scf.if %2 {
      %c0_8 = arith.constant 0 : index
      %c0_9 = arith.constant 0 : index
      %10 = vector.load %arg2[%c0_8, %c0_9] : memref<16x32xf32, #tpu.memory_space<vmem>>, vector<16x32xf32>
      %11 = arith.truncf %10 : vector<16x32xf32> to vector<16x32xbf16>
      %c0_10 = arith.constant 0 : index
      %c0_11 = arith.constant 0 : index
      %12 = vector.load %arg3[%c0_10, %c0_11] : memref<32x64xbf16, #tpu.memory_space<vmem>>, vector<32x64xbf16>
      %cst_12 = arith.constant dense<0.000000e+00> : vector<16x64xf32>
      %13 = tpu.matmul %11, %12, %cst_12 {dimension_numbers = #tpu.dot_dimension_numbers<[1], [0], [0], [1], [0, 0, 1, 1], [], []>} : vector<16x32xbf16>, vector<32x64xbf16>, vector<16x64xf32> -> vector<16x64xf32>
      %c0_13 = arith.constant 0 : index
      %c0_14 = arith.constant 0 : index
      %14 = vector.load %arg4[%c0_13, %c0_14] : memref<1x64xf32, #tpu.memory_space<vmem>>, vector<1x64xf32>
      %15 = vector.broadcast %14 : vector<1x64xf32> to vector<16x64xf32>
      %16 = arith.addf %13, %15 : vector<16x64xf32>
      %cst_15 = arith.constant 0.000000e+00 : f32
      %17 = vector.broadcast %cst_15 : f32 to vector<16x64xf32>
      %18 = arith.maximumf %16, %17 : vector<16x64xf32>
      %19 = arith.truncf %18 : vector<16x64xf32> to vector<16x64xbf16>
      %c0_16 = arith.constant 0 : index
      %c0_17 = arith.constant 0 : index
      %20 = vector.load %arg8[%c0_16, %c0_17] : memref<16x64xbf16, #tpu.memory_space<vmem>>, vector<16x64xbf16>
      tpu.vector_store %arg8[%c0_16, %c0_17], %19 {strides = array<i32>} : memref<16x64xbf16, #tpu.memory_space<vmem>>, vector<16x64xbf16>,
    } else {
    }
    %c0 = arith.constant 0 : index
    %c0_1 = arith.constant 0 : index
    %3 = vector.load %arg8[%c0, %c0_1] : memref<16x64xbf16, #tpu.memory_space<vmem>>, vector<16x64xbf16>
    %c0_2 = arith.constant 0 : index
    %c0_3 = arith.constant 0 : index
    %4 = vector.load %arg5[%c0_2, %c0_3] : memref<64x128xbf16, #tpu.memory_space<vmem>>, vector<64x128xbf16>
    %cst = arith.constant dense<0.000000e+00> : vector<16x128xf32>
    %5 = tpu.matmul %3, %4, %cst {dimension_numbers = #tpu.dot_dimension_numbers<[1], [0], [0], [1], [0, 0, 1, 1], [], []>} : vector<16x64xbf16>, vector<64x128xbf16>, vector<16x128xf32> -> vector<16x128xf32>
    %c0_4 = arith.constant 0 : index
    %c0_5 = arith.constant 0 : index
    %6 = vector.load %arg6[%c0_4, %c0_5] : memref<1x128xf32, #tpu.memory_space<vmem>>, vector<1x128xf32>
    %7 = vector.broadcast %6 : vector<1x128xf32> to vector<16x128xf32>
    %8 = arith.addf %5, %7 : vector<16x128xf32>
    %c0_6 = arith.constant 0 : index
    %c0_7 = arith.constant 0 : index
    %9 = vector.load %arg7[%c0_6, %c0_7] : memref<16x128xf32, #tpu.memory_space<vmem>>, vector<16x128xf32>
    tpu.vector_store %arg7[%c0_6, %c0_7], %8 {strides = array<i32>} : memref<16x128xf32, #tpu.memory_space<vmem>>, vector<16x128xf32>,
    return
  }
  func.func @transform_0(%arg0: i32, %arg1: i32) -> (i32, i32) {
    %c0_i32 = arith.constant 0 : i32
    %c0_i32_0 = arith.constant 0 : i32
    return %arg0, %c0_i32 : i32, i32
  }
  func.func @transform_1(%arg0: i32, %arg1: i32) -> (i32, i32) {
    %c0_i32 = arith.constant 0 : i32
    %c0_i32_0 = arith.constant 0 : i32
    %c0_i32_1 = arith.constant 0 : i32
    return %c0_i32, %c0_i32_0 : i32, i32
  }
  func.func @transform_2(%arg0: i32, %arg1: i32) -> (i32, i32) {
    %c0_i32 = arith.constant 0 : i32
    %c0_i32_0 = arith.constant 0 : i32
    %c0_i32_1 = arith.constant 0 : i32
    return %c0_i32, %c0_i32_0 : i32, i32
  }
  func.func @transform_3(%arg0: i32, %arg1: i32) -> (i32, i32) {
    %c0_i32 = arith.constant 0 : i32
    %c0_i32_0 = arith.constant 0 : i32
    return %c0_i32, %arg1 : i32, i32
  }
  func.func @transform_4(%arg0: i32, %arg1: i32) -> (i32, i32) {
    %c0_i32 = arith.constant 0 : i32
    %c0_i32_0 = arith.constant 0 : i32
    return %c0_i32, %arg1 : i32, i32
  }
  func.func @transform_5(%arg0: i32, %arg1: i32) -> (i32, i32) {
    %c0_i32 = arith.constant 0 : i32
    return %arg0, %arg1 : i32, i32
  }
}

</mosaic_0001>

<llo_original>
// kernel: forward.1
$region0: #{forward.1}
  #allocation0 [shape = 'u32[]', space=smem, size = 0x4, offset = 0x4, fixed_abs, tag = 'smem constant byte address 0x4 - core index']
  #allocation1 [shape = 'u32[72,128]{1,0:T(1,128)}', space=vmem, size = 0x9000, scoped, tag = 'internal scratch']
  #allocation2 [shape = 'bf16[16,64]{1,0:T(8,128)(2,1)}', space=vmem, size = 0x1000, scoped, tag = 'scratch operand']
  %s0 = inlined_call_operand.vmem [shape: f32[16,32], index: 0, kind: input, shape index: {}]
  %s1 = inlined_call_operand.vmem [shape: bf16[32,64], index: 1, kind: input, shape index: {}]
  %s2 = inlined_call_operand.vmem [shape: f32[1,64], index: 2, kind: input, shape index: {}]
  %s3 = inlined_call_operand.hbm [shape: bf16[64,128], index: 3, kind: input, shape index: {}]
  %s4 = inlined_call_operand.vmem [shape: f32[1,128], index: 4, kind: input, shape index: {}]
  %s5 = inlined_call_operand.vmem [shape: f32[16,128], index: 5, kind: output, shape index: {}]
  %s6 = sld [smem:[#allocation0]]
  $region38: #{forward.1} parent=0
    _
  %s8 = ssub.s32 1, %s6
  %s9 = scalar_select 0, %s8, %s6
  $region1: #{forward.1} parent=0
    #allocation3 [shape = 'u8[16384]{0}', space=vmem, size = 0x4000, scoped, tag = 'input window, operand 3, single buffered']
    #allocation4 [shape = 's32[1]{0}', space=sflag, size = 0x4, scoped, tag = 'scoped memory for forward.1']
    %10 = vsyncpa [#allocation4], 0
    // Predicated region
    $region2: #{forward.1} parent=1 // pred_check
      _
    $region3: #{forward.1} parent=1 // pred_check_branch
      %12 = sbr.rel (0) target = $region5
    $region4: #{forward.1} parent=1 // pred_region
      _
    $region5: #{forward.1} parent=1 // pred_fallthru
      _
    // Predicated region
    $region6: #{forward.1} parent=1 // pred_check
      _
    $region7: #{forward.1} parent=1 // pred_check_branch
      %14 = sbr.rel (0) target = $region9
    $region8: #{forward.1} parent=1 // pred_region
      _
    $region9: #{forward.1} parent=1 // pred_fallthru
      _
    // Predicated region
    $region10: #{forward.1} parent=1 // pred_check
      _
    $region11: #{forward.1} parent=1 // pred_check_branch
      %16 = sbr.rel (0) target = $region13
    $region12: #{forward.1} parent=1 // pred_region
      _
    $region13: #{forward.1} parent=1 // pred_fallthru
      _
    // Predicated region
    $region14: #{forward.1} parent=1 // pred_check
      _
    $region15: #{forward.1} parent=1 // pred_check_branch
      %18 = sbr.rel (0) target = $region17
    $region16: #{forward.1} parent=1 // pred_region
      %20 = vsyncadd [#allocation4], 0
      %s21 = sshll.u32 %s3, 4
      %s22 = int_to_ptr.hbm [resolvable:$true] %s21
      %s23 = sshll.u32 [#allocation3], 4
      %s24 = int_to_ptr.vmem [resolvable:$true] %s23
      %29 = dma.hbm_to_vmem [thread:$0]  %s22, 512, %s24, [#allocation4], 64, 64, 4
    $region17: #{forward.1} parent=1 // pred_fallthru
      _
    // Predicated region
    $region18: #{forward.1} parent=1 // pred_check
      _
    $region19: #{forward.1} parent=1 // pred_check_branch
      %31 = sbr.rel (0) target = $region21
    $region20: #{forward.1} parent=1 // pred_region
      _
    $region21: #{forward.1} parent=1 // pred_fallthru
      _
    // Predicated region
    $region22: #{forward.1} parent=1 // pred_check
      _
    $region23: #{forward.1} parent=1 // pred_check_branch
      %33 = sbr.rel (0) target = $region25
    $region24: #{forward.1} parent=1 // pred_region
      %35 = dma.done [#allocation4], 512
    $region25: #{forward.1} parent=1 // pred_fallthru
      _
    %p37 = scmp.eq.s32.totalorder 0, 0
    // Predicated region
    $region26: #{forward.1} parent=1 // pred_check
      %p38 = pneg %p37
    $region27: #{forward.1} parent=1 // pred_check_branch
      %40 = sbr.rel (%p38) target = $region29
    $region28: #{forward.1} parent=1 // pred_region
      %v41 = vld [vmem:[%s0] sm:$0xff]
      %v42 = vld [vmem:[%s0 + $0x8] sm:$0xff]
      %v43 = vpack.c.bf16 %v42, %v41
      %v44 = vld [vmem:[%s1] sm:$0xf]
      %v45 = vld [vmem:[%s1 + $0x4] sm:$0xf]
      %v46 = vld [vmem:[%s1 + $0x8] sm:$0xf]
      %v47 = vld [vmem:[%s1 + $0xc] sm:$0xf]
      %v48 = vld [vmem:[%s2] sm:$0x1]
      %v50 = vperm.slane %v48, 0
      %v56 = vunpack.c.l.b16 %v44
      %v57 = vunpack.c.l.b16 %v45
      %v58 = vunpack.c.l.b16 %v46
      %v59 = vunpack.c.l.b16 %v47
      %v60 = vpack.c.b16 %v57, %v56
      %v61 = vpack.c.b16 %v59, %v58
      %vm64 = vcmask 261120
      %v66 = vsel %vm64, %v43, 0
      %68 = vmatpush.bf16.msra.mxu0 0
      %69 = vmatpush.bf16.msra.mxu0 0
      %70 = vmatpush.bf16.msra.mxu0 0
      %71 = vmatpush.bf16.msra.mxu0 0
      %72 = vmatpush.bf16.msra.mxu0 0
      %73 = vmatpush.bf16.msra.mxu0 0
      %74 = vmatpush.bf16.msra.mxu0 %v61
      %75 = vmatpush.bf16.msra.mxu0 %v60
      %76 = vmatmul.bf16.gmra.mxu0 %v66
      %v77 = vpop.f32.mrf.mxu0
      %v78 = vadd.f32 %v50, %v77
      %v79 = vpop.f32.mrf.mxu0
      %v80 = vadd.f32 %v50, %v79
      %81 = vdwg.mxu0
      %v82 = vmax.f32 %v78, 0.0
      %v83 = vmax.f32 %v80, 0.0
      %v84 = vpack.c.bf16 %v82, %v82
      %v85 = vpack.c.bf16 %v83, %v83
      %vm86 = vcmask 519168
      %87 = vst.msk [vmem:[#allocation2] sm:$0xf] %vm86, %v84
      %88 = vst.msk [vmem:[#allocation2 + $0x4] sm:$0xf] %vm86, %v85
    $region29: #{forward.1} parent=1 // pred_fallthru
      _
    %v89 = vld [vmem:[#allocation2] sm:$0xf]
    %v90 = vld [vmem:[#allocation2 + $0x4] sm:$0xf]
    %v91 = vld [vmem:[#allocation3] sm:$0xf]
    %v92 = vld [vmem:[#allocation3 + $0x4] sm:$0xf]
    %v93 = vld [vmem:[#allocation3 + $0x8] sm:$0xf]
    %v94 = vld [vmem:[#allocation3 + $0xc] sm:$0xf]
    %v95 = vld [vmem:[#allocation3 + $0x10] sm:$0xf]
    %v96 = vld [vmem:[#allocation3 + $0x14] sm:$0xf]
    %v97 = vld [vmem:[#allocation3 + $0x18] sm:$0xf]
    %v98 = vld [vmem:[#allocation3 + $0x1c] sm:$0xf]
    %v99 = vld [vmem:[%s4] sm:$0x1]
    %v101 = vperm.slane %v99, 0
    %v105 = vunpack.c.l.b16 %v89
    %v106 = vunpack.c.l.b16 %v90
    %v107 = vpack.c.b16 %v106, %v105
    %v116 = vunpack.c.l.b16 %v91
    %v117 = vunpack.c.l.b16 %v92
    %v118 = vunpack.c.l.b16 %v93
    %v119 = vunpack.c.l.b16 %v94
    %v120 = vunpack.c.l.b16 %v95
    %v121 = vunpack.c.l.b16 %v96
    %v122 = vunpack.c.l.b16 %v97
    %v123 = vunpack.c.l.b16 %v98
    %v124 = vpack.c.b16 %v117, %v116
    %v125 = vpack.c.b16 %v119, %v118
    %v126 = vpack.c.b16 %v121, %v120
    %v127 = vpack.c.b16 %v123, %v122
    %vm132 = vcmask 523264
    %v134 = vsel %vm132, %v107, 0
    %136 = vmatpush.bf16.msra.mxu0 0
    %137 = vmatpush.bf16.msra.mxu0 0
    %138 = vmatpush.bf16.msra.mxu0 0
    %139 = vmatpush.bf16.msra.mxu0 0
    %140 = vmatpush.bf16.msra.mxu0 %v127
    %141 = vmatpush.bf16.msra.mxu0 %v126
    %142 = vmatpush.bf16.msra.mxu0 %v125
    %143 = vmatpush.bf16.msra.mxu0 %v124
    %144 = vmatmul.bf16.gmra.mxu0 %v134
    %v145 = vpop.f32.mrf.mxu0
    %v146 = vadd.f32 %v101, %v145
    %v147 = vpop.f32.mrf.mxu0
    %v148 = vadd.f32 %v101, %v147
    %149 = vdwg.mxu0
    %150 = vst [vmem:[%s5] sm:$0xff] %v146
    %151 = vst [vmem:[%s5 + $0x8] sm:$0xff] %v148
    // Predicated region
    $region30: #{forward.1} parent=1 // pred_check
      _
    $region31: #{forward.1} parent=1 // pred_check_branch
      %153 = sbr.rel (0) target = $region33
    $region32: #{forward.1} parent=1 // pred_region
      _
    $region33: #{forward.1} parent=1 // pred_fallthru
      _
    // Predicated region
    $region34: #{forward.1} parent=1 // pred_check
      _
    $region35: #{forward.1} parent=1 // pred_check_branch
      %155 = sbr.rel (0) target = $region37
    $region36: #{forward.1} parent=1 // pred_region
      _
    $region37: #{forward.1} parent=1 // pred_fallthru
      _
    %156 = vsyncpa [#allocation4], 1

</llo_original>
